<compile_context>
chip_gen: v7x
topology: tpu7x:2x2x1
jax: 0.10.0
libtpu: 0.0.40
codegen_flags: <defaults>
</compile_context>

<pallas_src>
import functools

import jax
import jax.numpy as jnp
from jax import lax
from jax.experimental import pallas as pl
from jax.experimental.pallas import tpu as pltpu


def _device_kind():
    try:
        return jax.devices()[0].device_kind.lower()
    except Exception:
        return ""


def _spatial_gather_kernel(probs_ref, feats_ref, out_ref,
                           m_scr, l_scr, acc_scr,
                           *, scale, rem, mxu_dtype):
    # probs_ref: (K, T)    feats_ref: (C_blk, T)    out_ref: (C_blk, K)
    # m_scr/l_scr: (K, 1) f32    acc_scr: (C_blk, K) f32
    t = pl.program_id(2)
    n_t = pl.num_programs(2)

    @pl.when(t == 0)
    def _init():
        m_scr[...] = jnp.full_like(m_scr, -jnp.inf)
        l_scr[...] = jnp.zeros_like(l_scr)
        acc_scr[...] = jnp.zeros_like(acc_scr)

    # Lane-dense (K, T) logits; scale folded in here (statically skipped at 1).
    logits = probs_ref[...].astype(jnp.float32)                 # (K, T)
    if scale != 1.0:
        logits = logits * jnp.float32(scale)

    feats_t = feats_ref[...]                                    # (C_blk, T)

    if rem:
        # Ragged last tile (block overhangs HW): mask invalid logit columns to
        # -1e30 (exact 0 softmax weight) AND zero the matching feats columns so
        # stale VMEM garbage (possibly NaN/Inf) can't leak into the matmul.
        T = logits.shape[1]
        lane = lax.broadcasted_iota(jnp.int32, (1, T), 1)        # (1, T)
        valid = jnp.logical_or(t != n_t - 1, lane < rem)         # (1, T)
        logits = jnp.where(valid, logits, jnp.float32(-1e30))
        feats_t = jnp.where(valid, feats_t, jnp.zeros((), feats_t.dtype))

    # Online softmax over the spatial axis, entirely in lane-dense (K, T)
    # layout (lane reduces / lane broadcasts); normalization deferred.
    m_prev = m_scr[...]                                          # (K, 1)
    m_new = jnp.maximum(m_prev, jnp.max(logits, axis=1, keepdims=True))
    alpha = jnp.exp(m_prev - m_new)                              # (K, 1)
    e = jnp.exp(logits - m_new)                                  # (K, T) unnormalized
    m_scr[...] = m_new
    l_scr[...] = alpha * l_scr[...] + jnp.sum(e, axis=1, keepdims=True)

    # (C_blk, T) x (K, T) contracting T on BOTH operands -> (C_blk, K).
    # The big feats tile is fed to the MXU in its native layout; only the
    # small exp tile is (implicitly) transposed, after the dtype cast.
    partial = lax.dot_general(
        feats_t.astype(mxu_dtype), e.astype(mxu_dtype),
        dimension_numbers=(((1,), (1,)), ((), ())),
        preferred_element_type=jnp.float32)                      # (C_blk, K)
    acc_scr[...] = acc_scr[...] * jnp.transpose(alpha) + partial

    @pl.when(t == n_t - 1)
    def _finalize():
        # Deferred normalization: (sum_t e_t @ F_t) / l == softmax @ F.
        inv_l = pl.reciprocal(l_scr[...], approx=False)          # (K, 1), EUP
        out_ref[...] = (acc_scr[...] * jnp.transpose(inv_l)).astype(out_ref.dtype)


def spatial_gather(feats, probs, scale=1.0, hw_tile=None, c_block=None,
                   mxu_dtype=None, vmem_budget_bytes=None):
    """feats: (B, C, H, W), probs: (B, K, H, W)  ->  (B, C, K, 1)"""
    B, C, H, W = feats.shape
    Bp, K, Hp, Wp = probs.shape
    assert (B, H, W) == (Bp, Hp, Wp)
    HW = H * W

    # Native layouts only — no pads, no transposes, no extra HBM passes.
    probs_r = probs.reshape(B, K, HW)          # (B, K, HW)
    feats_r = feats.reshape(B, C, HW)          # (B, C, HW)

    feat_bytes = jnp.dtype(feats.dtype).itemsize
    prob_bytes = jnp.dtype(probs.dtype).itemsize

    kind = _device_kind()
    is_v7 = "v7" in kind

    # --- channel split: give both v7x TensorCores work when B is small.
    # Kept off on single-TC v5e/v6e where it would only add step overhead.
    if c_block is None:
        c_block = C
        if is_v7 and B == 1 and C >= 16 and (C // 2) % 8 == 0:
            c_block = C // 2
    c_block = int(c_block)
    assert C % c_block == 0 and (c_block == C or c_block % 8 == 0), \
        "c_block must divide C and be a multiple of 8 (or equal C)"
    n_c = C // c_block

    # --- spatial tile sized from a per-generation VMEM budget (double-buffered
    # input tiles + accumulator), not a fixed cap.
    if vmem_budget_bytes is None:
        vmem_budget_bytes = (40 << 20) if is_v7 else (72 << 20)
    if hw_tile is None:
        per_col = 2 * (c_block * feat_bytes + K * prob_bytes)   # 2x-buffered inputs / column
        fixed = c_block * K * (4 + 2 * feat_bytes) + 8 * K * 4 + (64 << 10)
        hw_tile = max(128, min((vmem_budget_bytes - fixed) // per_col, 8192))
    hw_tile = int(hw_tile)
    if hw_tile >= HW:
        hw_tile = HW                    # single tile; full-dim block dims are exempt
    else:
        hw_tile = max(128, (hw_tile // 128) * 128)
    n_hw = pl.cdiv(HW, hw_tile)
    rem = HW % hw_tile                  # >0 => ragged last tile, masked in-kernel

    # MXU input dtype: default = native feats dtype (exact vs. the f32
    # reference).  On v7x pass mxu_dtype=jnp.bfloat16 for f32 feats to halve
    # MXU passes (accumulation stays f32 via preferred_element_type).
    if mxu_dtype is None:
        mxu_dtype = feats.dtype
    mxu_dtype = jnp.dtype(mxu_dtype)

    kernel = functools.partial(_spatial_gather_kernel,
                               scale=float(scale), rem=int(rem),
                               mxu_dtype=mxu_dtype)

    # Explicit scoped-VMEM limit: what we actually use, plus headroom.
    est = (2 * hw_tile * (c_block * feat_bytes + K * prob_bytes)   # in tiles (2x-buffered)
           + 2 * c_block * K * feat_bytes                          # out block (2x-buffered)
           + c_block * K * 4 + 2 * K * 4)                          # f32 scratch
    vmem_limit = int(min(max(est + (4 << 20), 24 << 20), 100 << 20))

    out = pl.pallas_call(
        kernel,
        out_shape=jax.ShapeDtypeStruct((B, C, K), feats.dtype),
        grid_spec=pltpu.PrefetchScalarGridSpec(
            num_scalar_prefetch=0,
            grid=(B, n_c, n_hw),
            in_specs=[
                pl.BlockSpec((None, K, hw_tile), lambda b, c, t: (b, 0, t)),
                pl.BlockSpec((None, c_block, hw_tile), lambda b, c, t: (b, c, t)),
            ],
            out_specs=pl.BlockSpec((None, c_block, K), lambda b, c, t: (b, c, 0)),
            scratch_shapes=[
                pltpu.VMEM((K, 1), jnp.float32),        # running max   m
                pltpu.VMEM((K, 1), jnp.float32),        # running denom l
                pltpu.VMEM((c_block, K), jnp.float32),  # running ctx accumulator
            ],
        ),
        compiler_params=pltpu.CompilerParams(
            dimension_semantics=("parallel", "parallel", "arbitrary"),
            vmem_limit_bytes=vmem_limit),
    )(probs_r, feats_r)

    # Already in output orientation: (B, C, K) -> (B, C, K, 1).
    return out[..., None]


def spatial_gather_ref(feats, probs, scale=1.0):
    B, C, H, W = feats.shape
    K = probs.shape[1]
    p = probs.reshape(B, K, -1)
    f = feats.reshape(B, C, -1).transpose(0, 2, 1)
    p = jax.nn.softmax(scale * p, axis=2)
    ctx = jnp.einsum("bkn,bnc->bkc", p, f)
    return ctx.transpose(0, 2, 1)[..., None]


if __name__ == "__main__":
    key = jax.random.PRNGKey(0)

    # Check 1: multi-tile online softmax (HW=256 -> two 128-wide tiles, rem=0),
    # K=4 unpadded (full-dim BlockSpec exemption), scale == 1.0 (mul skipped).
    kf, kp, key = jax.random.split(key, 3)
    B, C, K, H, W = 2, 32, 4, 16, 16
    feats = jax.random.normal(kf, (B, C, H, W), dtype=jnp.float32)
    probs = jax.random.normal(kp, (B, K, H, W), dtype=jnp.float32)
    out = spatial_gather(feats, probs, scale=1.0, hw_tile=128)
    jax.block_until_ready(out)
    ref = spatial_gather_ref(feats, probs, scale=1.0)
    assert out.shape == (B, C, K, 1), out.shape
    assert jnp.allclose(out, ref, atol=1e-5, rtol=1e-5), "mismatch (check 1)"

    # Check 2: ragged HW (255 -> 128 + 127-wide masked last tile, no HBM pad),
    # non-unit scale, explicit channel split (c_block=16 -> 3 C blocks).
    kf2, kp2, key = jax.random.split(key, 3)
    B2, C2, K2, H2, W2 = 1, 48, 5, 15, 17
    feats2 = jax.random.normal(kf2, (B2, C2, H2, W2), dtype=jnp.float32)
    probs2 = jax.random.normal(kp2, (B2, K2, H2, W2), dtype=jnp.float32)
    out2 = spatial_gather(feats2, probs2, scale=2.0, hw_tile=128, c_block=16)
    jax.block_until_ready(out2)
    ref2 = spatial_gather_ref(feats2, probs2, scale=2.0)
    assert out2.shape == (B2, C2, K2, 1), out2.shape
    assert jnp.allclose(out2, ref2, atol=1e-5, rtol=1e-5), "mismatch (check 2)"

    # Check 3: bf16 feats/probs (halved HBM stream, bf16 MXU operands), auto
    # tile selection (single full-HW tile), f32 accumulation. Loose tolerance
    # accounts for bf16 inputs/output.
    kf3, kp3, _ = jax.random.split(key, 3)
    B3, C3, K3, H3, W3 = 1, 16, 3, 8, 8
    feats3 = jax.random.normal(kf3, (B3, C3, H3, W3), dtype=jnp.bfloat16)
    probs3 = jax.random.normal(kp3, (B3, K3, H3, W3), dtype=jnp.bfloat16)
    out3 = spatial_gather(feats3, probs3, scale=1.0)
    jax.block_until_ready(out3)
    ref3 = spatial_gather_ref(feats3.astype(jnp.float32),
                              probs3.astype(jnp.float32), scale=1.0)
    assert out3.shape == (B3, C3, K3, 1), out3.shape
    assert jnp.allclose(out3.astype(jnp.float32), ref3, atol=3e-2, rtol=3e-2), \
        "mismatch (check 3)"

    print("KERNEL_OK")
</pallas_src>

<mosaic_0001>
module attributes {stable_mosaic.version = 11 : i64} {
  func.func @_spatial_gather_kernel(%arg0: i32, %arg1: i32, %arg2: i32, %arg3: memref<1x4x128xf32, #tpu.memory_space<vmem>>, %arg4: memref<1x32x128xf32, #tpu.memory_space<vmem>>, %arg5: memref<1x32x4xf32, #tpu.memory_space<vmem>>, %arg6: memref<4x1xf32, #tpu.memory_space<vmem>>, %arg7: memref<4x1xf32, #tpu.memory_space<vmem>>, %arg8: memref<32x4xf32, #tpu.memory_space<vmem>>) attributes {dimension_semantics = [#tpu.dimension_semantics<parallel>, #tpu.dimension_semantics<parallel>, #tpu.dimension_semantics<arbitrary>], iteration_bounds = array<i64: 2, 1, 2>, scalar_prefetch = 0 : i64, scratch_operands = 3 : i64, tpu.core_type = #tpu.core_type<tc>, window_params = [{transform_indices = @transform_0, window_bounds = array<i64: 1, 4, 128>}, {transform_indices = @transform_1, window_bounds = array<i64: 1, 32, 128>}, {transform_indices = @transform_2, window_bounds = array<i64: 1, 32, 4>}]} {
    %c0_i32 = arith.constant 0 : i32
    %0 = arith.cmpi eq, %arg2, %c0_i32 : i32
    %1 = arith.extui %0 : i1 to i32
    %c0_i32_0 = arith.constant 0 : i32
    %2 = arith.cmpi ne, %1, %c0_i32_0 : i32
    scf.if %2 {
      %cst_21 = arith.constant 0xFF800000 : f32
      %33 = vector.broadcast %cst_21 : f32 to vector<4x1xf32>
      %c0_22 = arith.constant 0 : index
      %c0_23 = arith.constant 0 : index
      %34 = vector.load %arg6[%c0_22, %c0_23] : memref<4x1xf32, #tpu.memory_space<vmem>>, vector<4x1xf32>
      tpu.vector_store %arg6[%c0_22, %c0_23], %33 {strides = array<i32>} : memref<4x1xf32, #tpu.memory_space<vmem>>, vector<4x1xf32>,
      %cst_24 = arith.constant 0.000000e+00 : f32
      %35 = vector.broadcast %cst_24 : f32 to vector<4x1xf32>
      %c0_25 = arith.constant 0 : index
      %c0_26 = arith.constant 0 : index
      %36 = vector.load %arg7[%c0_25, %c0_26] : memref<4x1xf32, #tpu.memory_space<vmem>>, vector<4x1xf32>
      tpu.vector_store %arg7[%c0_25, %c0_26], %35 {strides = array<i32>} : memref<4x1xf32, #tpu.memory_space<vmem>>, vector<4x1xf32>,
      %cst_27 = arith.constant 0.000000e+00 : f32
      %37 = vector.broadcast %cst_27 : f32 to vector<32x4xf32>
      %c0_28 = arith.constant 0 : index
      %c0_29 = arith.constant 0 : index
      %38 = vector.load %arg8[%c0_28, %c0_29] : memref<32x4xf32, #tpu.memory_space<vmem>>, vector<32x4xf32>
      tpu.vector_store %arg8[%c0_28, %c0_29], %37 {strides = array<i32>} : memref<32x4xf32, #tpu.memory_space<vmem>>, vector<32x4xf32>,
    } else {
    }
    %c0 = arith.constant 0 : index
    %c0_1 = arith.constant 0 : index
    %c0_2 = arith.constant 0 : index
    %3 = vector.load %arg3[%c0, %c0_1, %c0_2] : memref<1x4x128xf32, #tpu.memory_space<vmem>>, vector<1x4x128xf32>
    %4 = vector.shape_cast %3 : vector<1x4x128xf32> to vector<4x128xf32>
    %c0_3 = arith.constant 0 : index
    %c0_4 = arith.constant 0 : index
    %c0_5 = arith.constant 0 : index
    %5 = vector.load %arg4[%c0_3, %c0_4, %c0_5] : memref<1x32x128xf32, #tpu.memory_space<vmem>>, vector<1x32x128xf32>
    %6 = vector.shape_cast %5 : vector<1x32x128xf32> to vector<32x128xf32>
    %c0_6 = arith.constant 0 : index
    %c0_7 = arith.constant 0 : index
    %7 = vector.load %arg6[%c0_6, %c0_7] : memref<4x1xf32, #tpu.memory_space<vmem>>, vector<4x1xf32>
    %cst = arith.constant dense<0xFF800000> : vector<4xf32>
    %8 = vector.multi_reduction <maximumf>, %4, %cst [1] : vector<4x128xf32> to vector<4xf32>
    %9 = vector.shape_cast %8 : vector<4xf32> to vector<4x1xf32>
    %10 = arith.maximumf %7, %9 : vector<4x1xf32>
    %11 = arith.subf %7, %10 : vector<4x1xf32>
    %12 = math.exp %11 : vector<4x1xf32>
    %13 = vector.broadcast %10 : vector<4x1xf32> to vector<4x128xf32>
    %14 = arith.subf %4, %13 : vector<4x128xf32>
    %15 = math.exp %14 : vector<4x128xf32>
    %c0_8 = arith.constant 0 : index
    %c0_9 = arith.constant 0 : index
    %16 = vector.load %arg6[%c0_8, %c0_9] : memref<4x1xf32, #tpu.memory_space<vmem>>, vector<4x1xf32>
    tpu.vector_store %arg6[%c0_8, %c0_9], %10 {strides = array<i32>} : memref<4x1xf32, #tpu.memory_space<vmem>>, vector<4x1xf32>,
    %c0_10 = arith.constant 0 : index
    %c0_11 = arith.constant 0 : index
    %17 = vector.load %arg7[%c0_10, %c0_11] : memref<4x1xf32, #tpu.memory_space<vmem>>, vector<4x1xf32>
    %18 = arith.mulf %12, %17 : vector<4x1xf32>
    %cst_12 = arith.constant dense<0.000000e+00> : vector<4xf32>
    %19 = vector.multi_reduction <add>, %15, %cst_12 [1] : vector<4x128xf32> to vector<4xf32>
    %20 = vector.shape_cast %19 : vector<4xf32> to vector<4x1xf32>
    %21 = arith.addf %18, %20 : vector<4x1xf32>
    %c0_13 = arith.constant 0 : index
    %c0_14 = arith.constant 0 : index
    %22 = vector.load %arg7[%c0_13, %c0_14] : memref<4x1xf32, #tpu.memory_space<vmem>>, vector<4x1xf32>
    tpu.vector_store %arg7[%c0_13, %c0_14], %21 {strides = array<i32>} : memref<4x1xf32, #tpu.memory_space<vmem>>, vector<4x1xf32>,
    %cst_15 = arith.constant dense<0.000000e+00> : vector<32x4xf32>
    %23 = tpu.matmul %6, %15, %cst_15 {dimension_numbers = #tpu.dot_dimension_numbers<[1], [1], [0], [0], [0, 0, 1, 0], [], []>} : vector<32x128xf32>, vector<4x128xf32>, vector<32x4xf32> -> vector<32x4xf32>
    %c0_16 = arith.constant 0 : index
    %c0_17 = arith.constant 0 : index
    %24 = vector.load %arg8[%c0_16, %c0_17] : memref<32x4xf32, #tpu.memory_space<vmem>>, vector<32x4xf32>
    %25 = tpu.transpose %12, [1, 0] : vector<4x1xf32> -> vector<1x4xf32>
    %26 = vector.broadcast %25 : vector<1x4xf32> to vector<32x4xf32>
    %27 = arith.mulf %24, %26 : vector<32x4xf32>
    %28 = arith.addf %27, %23 : vector<32x4xf32>
    %c0_18 = arith.constant 0 : index
    %c0_19 = arith.constant 0 : index
    %29 = vector.load %arg8[%c0_18, %c0_19] : memref<32x4xf32, #tpu.memory_space<vmem>>, vector<32x4xf32>
    tpu.vector_store %arg8[%c0_18, %c0_19], %28 {strides = array<i32>} : memref<32x4xf32, #tpu.memory_space<vmem>>, vector<32x4xf32>,
    %c1_i32 = arith.constant 1 : i32
    %30 = arith.cmpi eq, %arg2, %c1_i32 : i32
    %31 = arith.extui %30 : i1 to i32
    %c0_i32_20 = arith.constant 0 : i32
    %32 = arith.cmpi ne, %31, %c0_i32_20 : i32
    scf.if %32 {
      %c0_21 = arith.constant 0 : index
      %c0_22 = arith.constant 0 : index
      %33 = vector.load %arg7[%c0_21, %c0_22] : memref<4x1xf32, #tpu.memory_space<vmem>>, vector<4x1xf32>
      %34 = tpu.reciprocal %33 : vector<4x1xf32> -> vector<4x1xf32>
      %c0_23 = arith.constant 0 : index
      %c0_24 = arith.constant 0 : index
      %35 = vector.load %arg8[%c0_23, %c0_24] : memref<32x4xf32, #tpu.memory_space<vmem>>, vector<32x4xf32>
      %36 = tpu.transpose %34, [1, 0] : vector<4x1xf32> -> vector<1x4xf32>
      %37 = vector.broadcast %36 : vector<1x4xf32> to vector<32x4xf32>
      %38 = arith.mulf %35, %37 : vector<32x4xf32>
      %c0_25 = arith.constant 0 : index
      %c0_26 = arith.constant 0 : index
      %c0_27 = arith.constant 0 : index
      %39 = vector.load %arg5[%c0_25, %c0_26, %c0_27] : memref<1x32x4xf32, #tpu.memory_space<vmem>>, vector<1x32x4xf32>
      %40 = vector.shape_cast %39 : vector<1x32x4xf32> to vector<32x4xf32>
      %41 = vector.shape_cast %38 : vector<32x4xf32> to vector<1x32x4xf32>
      tpu.vector_store %arg5[%c0_25, %c0_26, %c0_27], %41 {strides = array<i32>} : memref<1x32x4xf32, #tpu.memory_space<vmem>>, vector<1x32x4xf32>,
    } else {
    }
    return
  }
  func.func @transform_0(%arg0: i32, %arg1: i32, %arg2: i32) -> (i32, i32, i32) {
    %c0_i32 = arith.constant 0 : i32
    %c0_i32_0 = arith.constant 0 : i32
    return %arg0, %c0_i32, %arg2 : i32, i32, i32
  }
  func.func @transform_1(%arg0: i32, %arg1: i32, %arg2: i32) -> (i32, i32, i32) {
    %c0_i32 = arith.constant 0 : i32
    return %arg0, %arg1, %arg2 : i32, i32, i32
  }
  func.func @transform_2(%arg0: i32, %arg1: i32, %arg2: i32) -> (i32, i32, i32) {
    %c0_i32 = arith.constant 0 : i32
    %c0_i32_0 = arith.constant 0 : i32
    return %arg0, %arg1, %c0_i32 : i32, i32, i32
  }
}

</mosaic_0001>

<llo_original>
// kernel: tpu_custom_call.1
$region0: #{tpu_custom_call.1}
  #allocation0 [shape = 'u32[]', space=smem, size = 0x4, offset = 0x4, fixed_abs, tag = 'smem constant byte address 0x4 - core index']
  #allocation1 [shape = 'u32[144,128]{1,0:T(1,128)}', space=vmem, size = 0x12000, scoped, tag = 'internal scratch']
  #allocation2 [shape = 'f32[4,1]{1,0:T(4,128)}', space=vmem, size = 0x800, scoped, tag = 'scratch operand']
  #allocation3 [shape = 'f32[4,1]{1,0:T(4,128)}', space=vmem, size = 0x800, scoped, tag = 'scratch operand']
  #allocation4 [shape = 'f32[32,4]{1,0:T(8,128)}', space=vmem, size = 0x4000, scoped, tag = 'scratch operand']
  %s0 = inlined_call_operand.hbm [shape: f32[2,4,256], index: 0, kind: input, shape index: {}]
  %s1 = inlined_call_operand.hbm [shape: f32[2,32,256], index: 1, kind: input, shape index: {}]
  %s2 = inlined_call_operand.vmem [shape: f32[2,32,4], index: 2, kind: output, shape index: {}]
  %s3 = sld [smem:[#allocation0]]
  $region57: #{tpu_custom_call.1} parent=0
    _
  %s5 = ssub.s32 1, %s3
  %s6 = scalar_select 0, %s5, %s3
  $region1: #{tpu_custom_call.1} parent=0
    #allocation5 [shape = 'u8[4096]{0}', space=vmem, size = 0x1000, scoped, tag = 'input window, operand 0']
    #allocation6 [shape = 's32[2]{0}', space=sflag, size = 0x8, scoped, tag = 'scoped memory for tpu_custom_call.1']
    #allocation7 [shape = 'u8[32768]{0}', space=vmem, size = 0x8000, scoped, tag = 'input window, operand 1']
    #allocation8 [shape = 's32[2]{0}', space=sflag, size = 0x8, scoped, tag = 'scoped memory for tpu_custom_call.1']
    %7 = vsyncpa [#allocation6], 0
    %s8 = scalar_lea.sflag [#allocation6], 1
    %9 = vsyncpa %s8, 0
    %10 = vsyncpa [#allocation8], 0
    %s11 = scalar_lea.sflag [#allocation8], 1
    %12 = vsyncpa %s11, 0
    loop: start=0, step=1, limit=6
    $region2: #{tpu_custom_call.1} parent=1 // loop_pre_header
      _
    $region3: #{tpu_custom_call.1} parent=1 // loop_header
      %s14 = sphi 0, %s18
      %p15 = scmp.ge.s32.totalorder %s14, 6
      %s21 = sphi 0, %s40
      %s22 = sphi 0, %s36
      %s23 = sphi 0, %s32
      %s24 = sphi 0, %s21
      %s25 = sphi 0, %s22
      %s26 = sphi 0, %s23
      %s27 = sphi 0, %s24
      %s28 = sphi 0, %s25
      %s29 = sphi 0, %s26
      %s45 = sphi 0, %s47
      %s48 = sphi 0, %s45
      %s49 = sphi 0, %s48
      %s65 = sphi 0, %s49
      %s75 = sphi 0, %s77
      %s78 = sphi 0, %s75
      %s79 = sphi 0, %s78
      %s95 = sphi 0, %s79
      %s103 = sphi 0, %s105
      %s106 = sphi 0, %s103
      %s107 = sphi 0, %s106
      %s123 = sphi 0, %s107
    $region4: #{tpu_custom_call.1} parent=1 // loop_header_branch
      %17 = sbr.rel (%p15) target = $region8
    $region5: #{tpu_custom_call.1} parent=1 // loop_body
      %s19 = ssub.s32 %s14, 1
      %s20 = ssub.s32 %s14, 2
      %s30 = sadd.s32 1, %s23
      %p31 = scmp.ge.s32.totalorder %s30, 2
      %s32 = scalar_select %p31, 0, %s30
      %s33 = sadd.s32 1, %s22
      %s34 = scalar_select %p31, %s33, %s22
      %p35 = scmp.ge.s32.totalorder %s34, 1
      %s36 = scalar_select %p35, 0, %s34
      %s37 = sadd.s32 1, %s21
      %s38 = scalar_select %p35, %s37, %s21
      %p39 = scmp.ge.s32.totalorder %s38, 2
      %s40 = scalar_select %p39, 0, %s38
      %s41 = ssub.s32 %s21, %s40
      %s42 = ssub.s32 %s23, %s32
      %s43 = sor.u32 %s41, %s42
      %p44 = scmp.eq.s32.totalorder %s43, 0
      %s46 = sadd.s32 %s45, 1
      %s47 = scalar_select %p44, %s45, %s46
      %p50 = pneg %p44
      %p51 = scmp.eq.s32.totalorder %s14, 3
      %p52 = por %p50, %p51
      %p53 = scmp.ne.s32.totalorder %s45, %s48
      %p54 = scmp.eq.s32.totalorder %s14, 0
      %p55 = por %p53, %p54
      %p56 = scmp.ne.s32.totalorder %s45, %s48
      %p57 = scmp.eq.s32.totalorder %s19, 3
      %p58 = por %p56, %p57
      %p59 = scmp.ne.s32.totalorder %s48, %s49
      %p60 = scmp.eq.s32.totalorder %s19, 0
      %p61 = por %p59, %p60
      %p62 = scmp.ne.s32.totalorder %s48, %s49
      %p63 = scmp.eq.s32.totalorder %s20, 3
      %p64 = por %p62, %p63
      %p66 = scmp.ne.s32.totalorder %s49, %s65
      %p67 = scmp.eq.s32.totalorder %s20, 0
      %p68 = por %p66, %p67
      %s69 = ssub.s32 %s21, %s40
      %s70 = ssub.s32 %s22, %s36
      %s71 = sor.u32 %s69, %s70
      %s72 = ssub.s32 %s23, %s32
      %s73 = sor.u32 %s71, %s72
      %p74 = scmp.eq.s32.totalorder %s73, 0
      %s76 = sadd.s32 %s75, 1
      %s77 = scalar_select %p74, %s75, %s76
      %p80 = pneg %p74
      %p81 = scmp.eq.s32.totalorder %s14, 3
      %p82 = por %p80, %p81
      %p83 = scmp.ne.s32.totalorder %s75, %s78
      %p84 = scmp.eq.s32.totalorder %s14, 0
      %p85 = por %p83, %p84
      %p86 = scmp.ne.s32.totalorder %s75, %s78
      %p87 = scmp.eq.s32.totalorder %s19, 3
      %p88 = por %p86, %p87
      %p89 = scmp.ne.s32.totalorder %s78, %s79
      %p90 = scmp.eq.s32.totalorder %s19, 0
      %p91 = por %p89, %p90
      %p92 = scmp.ne.s32.totalorder %s78, %s79
      %p93 = scmp.eq.s32.totalorder %s20, 3
      %p94 = por %p92, %p93
      %p96 = scmp.ne.s32.totalorder %s79, %s95
      %p97 = scmp.eq.s32.totalorder %s20, 0
      %p98 = por %p96, %p97
      %s99 = ssub.s32 %s21, %s40
      %s100 = ssub.s32 %s22, %s36
      %s101 = sor.u32 %s99, %s100
      %p102 = scmp.eq.s32.totalorder %s101, 0
      %s104 = sadd.s32 %s103, 1
      %s105 = scalar_select %p102, %s103, %s104
      %p108 = pneg %p102
      %p109 = scmp.eq.s32.totalorder %s14, 3
      %p110 = por %p108, %p109
      %p111 = scmp.ne.s32.totalorder %s103, %s106
      %p112 = scmp.eq.s32.totalorder %s14, 0
      %p113 = por %p111, %p112
      %p114 = scmp.ne.s32.totalorder %s103, %s106
      %p115 = scmp.eq.s32.totalorder %s19, 3
      %p116 = por %p114, %p115
      %p117 = scmp.ne.s32.totalorder %s106, %s107
      %p118 = scmp.eq.s32.totalorder %s19, 0
      %p119 = por %p117, %p118
      %p120 = scmp.ne.s32.totalorder %s106, %s107
      %p121 = scmp.eq.s32.totalorder %s20, 3
      %p122 = por %p120, %p121
      %p124 = scmp.ne.s32.totalorder %s107, %s123
      %p125 = scmp.eq.s32.totalorder %s20, 0
      %p126 = por %p124, %p125
      %p127 = scmp.le.s32.totalorder 1, %s14
      %p128 = scmp.lt.s32.totalorder %s14, 5
      %p129 = pnand %p127, %p128
      %p130 = pneg %p129
      // Predicated region
      $region9: #{tpu_custom_call.1} parent=5 // pred_check
        _
      $region10: #{tpu_custom_call.1} parent=5 // pred_check_branch
        %132 = sbr.rel (%p129) target = $region12
      $region11: #{tpu_custom_call.1} parent=5 // pred_region
        %s133 = ssub.s32 %s14, 1
      $region12: #{tpu_custom_call.1} parent=5 // pred_fallthru
        _
      %p134 = scmp.lt.s32.totalorder %s14, 4
      // Predicated region
      $region13: #{tpu_custom_call.1} parent=5 // pred_check
        %p135 = pneg %p134
      $region14: #{tpu_custom_call.1} parent=5 // pred_check_branch
        %137 = sbr.rel (%p135) target = $region16
      $region15: #{tpu_custom_call.1} parent=5 // pred_region
        // Predicated region
        $region17: #{tpu_custom_call.1} parent=15 // pred_check
          %p138 = pneg %p55
        $region18: #{tpu_custom_call.1} parent=15 // pred_check_branch
          %140 = sbr.rel (%p138) target = $region20
        $region19: #{tpu_custom_call.1} parent=15 // pred_region
          %s141 = sand.u32 %s45, 1
          %s142 = scalar_lea.sflag [#allocation6], %s141
          %s143 = sand.u32 %s45, 1
          %s144 = smul.addr %s143, 4
          %s145 = scalar_lea.vmem [#allocation5], %s144
          %s147 = ssub.s32 64, 64
          %148 = vsyncadd %s142, %s147
          %s149 = smul.addr %s21, 2
          %s150 = sadd.s32 %s23, %s149
          %s151 = smul.addr %s150, 64
          %s152 = scalar_lea.hbm %s0, %s151
          %s154 = sshll.u32 %s145, 4
          %s155 = int_to_ptr.vmem [resolvable:$true] %s154
          %157 = dma.hbm_to_vmem [thread:$0]  %s152, 64, %s155, %s142
        $region20: #{tpu_custom_call.1} parent=15 // pred_fallthru
          _
        // Predicated region
        $region21: #{tpu_custom_call.1} parent=15 // pred_check
          %p158 = pneg %p85
        $region22: #{tpu_custom_call.1} parent=15 // pred_check_branch
          %160 = sbr.rel (%p158) target = $region24
        $region23: #{tpu_custom_call.1} parent=15 // pred_region
          %s161 = sand.u32 %s75, 1
          %s162 = scalar_lea.sflag [#allocation8], %s161
          %s163 = sand.u32 %s75, 1
          %s164 = smul.addr %s163, 32
          %s165 = scalar_lea.vmem [#allocation7], %s164
          %s166 = smul.u32 4, %s22
          %s168 = ssub.s32 512, 512
          %169 = vsyncadd %s162, %s168
          %s170 = smul.addr %s166, 2
          %s171 = sadd.s32 %s23, %s170
          %s172 = smul.addr %s21, 8
          %s173 = sadd.s32 %s171, %s172
          %s174 = smul.addr %s173, 128
          %s175 = scalar_lea.hbm %s1, %s174
          %s176 = sshll.u32 %s165, 4
          %s177 = int_to_ptr.vmem [resolvable:$true] %s176
          %182 = dma.hbm_to_vmem [thread:$0]  %s175, 512, %s177, %s162, 256, 128, 8
        $region24: #{tpu_custom_call.1} parent=15 // pred_fallthru
          _
      $region16: #{tpu_custom_call.1} parent=5 // pred_fallthru
        _
      %p183 = scmp.le.s32.totalorder 1, %s14
      %p184 = scmp.lt.s32.totalorder %s14, 5
      %p185 = pnand %p183, %p184
      %p186 = pneg %p185
      // Predicated region
      $region25: #{tpu_custom_call.1} parent=5 // pred_check
        _
      $region26: #{tpu_custom_call.1} parent=5 // pred_check_branch
        %188 = sbr.rel (%p185) target = $region28
      $region27: #{tpu_custom_call.1} parent=5 // pred_region
        %s189 = ssub.s32 %s14, 1
        %s190 = sand.u32 %s48, 1
        %s191 = scalar_lea.sflag [#allocation6], %s190
        %s192 = sand.u32 %s48, 1
        %s193 = smul.addr %s192, 4
        %s194 = scalar_lea.vmem [#allocation5], %s193
        // Predicated region
        $region29: #{tpu_custom_call.1} parent=27 // pred_check
          %p195 = pneg %p61
        $region30: #{tpu_custom_call.1} parent=27 // pred_check_branch
          %197 = sbr.rel (%p195) target = $region32
        $region31: #{tpu_custom_call.1} parent=27 // pred_region
          %198 = dma.done %s191, 64
        $region32: #{tpu_custom_call.1} parent=27 // pred_fallthru
          _
        %s199 = sand.u32 %s78, 1
        %s200 = scalar_lea.sflag [#allocation8], %s199
        %s201 = sand.u32 %s78, 1
        %s202 = smul.addr %s201, 32
        %s203 = scalar_lea.vmem [#allocation7], %s202
        // Predicated region
        $region33: #{tpu_custom_call.1} parent=27 // pred_check
          %p204 = pneg %p91
        $region34: #{tpu_custom_call.1} parent=27 // pred_check_branch
          %206 = sbr.rel (%p204) target = $region36
        $region35: #{tpu_custom_call.1} parent=27 // pred_region
          %207 = dma.done %s200, 512
        $region36: #{tpu_custom_call.1} parent=27 // pred_fallthru
          _
        %s208 = sand.u32 %s48, 1
        %s209 = scalar_lea.sflag [#allocation6], %s208
        %s210 = sand.u32 %s48, 1
        %s211 = smul.addr %s210, 4
        %s212 = scalar_lea.vmem [#allocation5], %s211
        %p213 = pneg %p61
        %p214 = pneg %p58
        %s215 = sand.u32 %s78, 1
        %s216 = scalar_lea.sflag [#allocation8], %s215
        %s217 = sand.u32 %s78, 1
        %s218 = smul.addr %s217, 32
        %s219 = scalar_lea.vmem [#allocation7], %s218
        %p220 = pneg %p91
        %p221 = pneg %p88
        %p222 = pneg %p119
        %p223 = pneg %p116
        %s224 = smul.u32 4, %s25
        %p225 = scmp.lt.s32.totalorder %s24, 1
        %s226 = scalar_select %p225, %s24, 1
        %p227 = scmp.lt.s32.totalorder %s224, 3
        %s228 = scalar_select %p227, %s224, 3
        %s229 = smul.addr %s226, 4
        %s230 = sadd.s32 %s228, %s229
        %s231 = smul.addr %s230, 8
        %s232 = scalar_lea.vmem %s2, %s231
        %s233 = smul.u32 4, %s25
        %s234 = smul.u32 4, %s25
        %p235 = scmp.lt.s32.totalorder %s24, 1
        %s236 = scalar_select %p235, %s24, 1
        %p237 = scmp.lt.s32.totalorder %s234, 3
        %s238 = scalar_select %p237, %s234, 3
        %s239 = smul.addr %s236, 4
        %s240 = sadd.s32 %s238, %s239
        %s241 = smul.addr %s240, 8
        %s242 = scalar_lea.vmem %s2, %s241
        %s243 = smul.u32 4, %s25
        %p244 = scmp.eq.s32.totalorder %s26, 0
        // Predicated region
        $region37: #{tpu_custom_call.1} parent=27 // pred_check
          %p245 = pneg %p244
        $region38: #{tpu_custom_call.1} parent=27 // pred_check_branch
          %247 = sbr.rel (%p245) target = $region40
        $region39: #{tpu_custom_call.1} parent=27 // pred_region
          %vm248 = vcmask 3072
          %249 = vst.msk [vmem:[#allocation2] sm:$0xf] %vm248, -inf
          %250 = vst.msk [vmem:[#allocation3] sm:$0xf] %vm248, 0.0
          %vm251 = vcmask 31744
          %252 = vst.msk [vmem:[#allocation4] sm:$0xff] %vm251, 0.0
          %253 = vst.msk [vmem:[#allocation4 + $0x8] sm:$0xff] %vm251, 0.0
          %254 = vst.msk [vmem:[#allocation4 + $0x10] sm:$0xff] %vm251, 0.0
          %255 = vst.msk [vmem:[#allocation4 + $0x18] sm:$0xff] %vm251, 0.0
        $region40: #{tpu_custom_call.1} parent=27 // pred_fallthru
          _
        %v256 = vld [vmem:[%s194] sm:$0xf]
        %v257 = vld [vmem:[%s203] sm:$0xff]
        %v258 = vld [vmem:[%s203 + $0x8] sm:$0xff]
        %v259 = vld [vmem:[%s203 + $0x10] sm:$0xff]
        %v260 = vld [vmem:[%s203 + $0x18] sm:$0xff]
        %v261 = vld [vmem:[#allocation2] sm:$0xf]
        %vm262 = vcmask 1043456
        %v263 = vsel %vm262, %v256, -inf
        %264 = vmax.xlane.f32.xlu0 %v263
        %v265 = vpop.xlane.xlu0 %264
        %v266 = vmax.f32 %v261, %v265
        %v267 = vsub.f32 %v261, %v266
        %v268 = vmul.f32 %v267, 1.442695
        %v269 = vpow.pop %v268
        %271 = vset.pattern.permute.xlu0 0
        %272 = vperm.xlu0 %271, %v266
        %v273 = vpop.permute.xlu0 %272
        %v275 = vsub.f32 %v256, %v273
        %v276 = vmul.f32 %v275, 1.442695
        %v277 = vpow.pop %v276
        %vm278 = vcmask 3072
        %279 = vst.msk [vmem:[#allocation2] sm:$0xf] %vm278, %v266
        %v280 = vld [vmem:[#allocation3] sm:$0xf]
        %v281 = vmul.f32 %v269, %v280
        %v282 = vsel %vm262, %v277, 0.0
        %283 = vadd.xlane.f32.xlu0 %v282
        %v284 = vpop.xlane.xlu0 %283
        %v285 = vadd.f32 %v281, %v284
        %286 = vst.msk [vmem:[#allocation3] sm:$0xf] %vm278, %v285
        %287 = vmatprep.subr.mxu0 0.0
        %288 = vmatpush1.xpose.msra.mxu0 %v277
        %289 = vmatprep.subr.mxu0 0.0
        %290 = vmatpush1.xpose.msra.mxu0 0.0
        %291 = vmatprep.subr.mxu0 0.0
        %292 = vmatpush1.xpose.msra.mxu0 0.0
        %293 = vmatprep.subr.mxu0 0.0
        %294 = vmatpush1.xpose.msra.mxu0 0.0
        %295 = vmatprep.subr.mxu0 0.0
        %296 = vmatpush1.xpose.msra.mxu0 0.0
        %297 = vmatprep.subr.mxu0 0.0
        %298 = vmatpush1.xpose.msra.mxu0 0.0
        %299 = vmatprep.subr.mxu0 0.0
        %300 = vmatpush1.xpose.msra.mxu0 0.0
        %301 = vmatprep.subr.mxu0 0.0
        %302 = vmatpush1.xpose.msra.mxu0 0.0
        %303 = vmatprep.subr.mxu0 0.0
        %304 = vmatpush1.xpose.msra.mxu0 0.0
        %305 = vmatprep.subr.mxu0 0.0
        %306 = vmatpush1.xpose.msra.mxu0 0.0
        %307 = vmatprep.subr.mxu0 0.0
        %308 = vmatpush1.xpose.msra.mxu0 0.0
        %309 = vmatprep.subr.mxu0 0.0
        %310 = vmatpush1.xpose.msra.mxu0 0.0
        %311 = vmatprep.subr.mxu0 0.0
        %312 = vmatpush1.xpose.msra.mxu0 0.0
        %313 = vmatprep.subr.mxu0 0.0
        %314 = vmatpush1.xpose.msra.mxu0 0.0
        %315 = vmatprep.subr.mxu0 0.0
        %316 = vmatpush1.xpose.msra.mxu0 0.0
        %317 = vmatprep.subr.mxu0 0.0
        %318 = vmatpush1.xpose.msra.mxu0 0.0
        %319 = vmatprep.subr.mxu0 0.0
        %320 = vmatpush1.xpose.msra.mxu0 0.0
        %321 = vmatprep.subr.mxu0 0.0
        %322 = vmatpush1.xpose.msra.mxu0 0.0
        %323 = vmatprep.subr.mxu0 0.0
        %324 = vmatpush1.xpose.msra.mxu0 0.0
        %325 = vmatprep.subr.mxu0 0.0
        %326 = vmatpush1.xpose.msra.mxu0 0.0
        %327 = vmatprep.subr.mxu0 0.0
        %328 = vmatpush1.xpose.msra.mxu0 0.0
        %329 = vmatprep.subr.mxu0 0.0
        %330 = vmatpush1.xpose.msra.mxu0 0.0
        %331 = vmatprep.subr.mxu0 0.0
        %332 = vmatpush1.xpose.msra.mxu0 0.0
        %333 = vmatprep.subr.mxu0 0.0
        %334 = vmatpush1.xpose.msra.mxu0 0.0
        %335 = vmatprep.subr.mxu0 0.0
        %336 = vmatpush1.xpose.msra.mxu0 0.0
        %337 = vmatprep.subr.mxu0 0.0
        %338 = vmatpush1.xpose.msra.mxu0 0.0
        %339 = vmatprep.subr.mxu0 0.0
        %340 = vmatpush1.xpose.msra.mxu0 0.0
        %341 = vmatprep.subr.mxu0 0.0
        %342 = vmatpush1.xpose.msra.mxu0 0.0
        %343 = vmatprep.subr.mxu0 0.0
        %344 = vmatpush1.xpose.msra.mxu0 0.0
        %345 = vmatprep.subr.mxu0 0.0
        %346 = vmatpush1.xpose.msra.mxu0 0.0
        %347 = vmatprep.subr.mxu0 0.0
        %348 = vmatpush1.xpose.msra.mxu0 0.0
        %349 = vmatprep.subr.mxu0 0.0
        %350 = vmatpush1.xpose.msra.mxu0 0.0
        %351 = vmatprep.mubr.f32.mxu0 0.0
        %352 = vmatmul.mubr.f32.gmra.mrb[0].mxu0 %v257
        %v353 = vpop.f32.mrb[0].mxu0
        %v354 = vadd.f32 0.0, %v353
        %v355 = vpop.f32.mrb[0].mxu0
        %356 = vmatprep.mubr.f32.mxu0 0.0
        %357 = vmatmul.mubr.f32.gmra.mrb[0].mxu0 %v258
        %v358 = vpop.f32.mrb[0].mxu0
        %v359 = vadd.f32 0.0, %v358
        %v360 = vpop.f32.mrb[0].mxu0
        %361 = vmatprep.mubr.f32.mxu0 0.0
        %362 = vmatmul.mubr.f32.gmra.mrb[0].mxu0 %v259
        %v363 = vpop.f32.mrb[0].mxu0
        %v364 = vadd.f32 0.0, %v363
        %v365 = vpop.f32.mrb[0].mxu0
        %366 = vmatprep.mubr.f32.mxu0 0.0
        %367 = vmatmul.mubr.f32.gmra.mrb[0].mxu0 %v260
        %v368 = vpop.f32.mrb[0].mxu0
        %v369 = vadd.f32 0.0, %v368
        %v370 = vpop.f32.mrb[0].mxu0
        %371 = vdwg.mxu0
        %v372 = vld [vmem:[#allocation4] sm:$0xff]
        %v373 = vld [vmem:[#allocation4 + $0x8] sm:$0xff]
        %v374 = vld [vmem:[#allocation4 + $0x10] sm:$0xff]
        %v375 = vld [vmem:[#allocation4 + $0x18] sm:$0xff]
        %376 = vxpose.xlu0.b32.start [1/16] %v269, 128
        %377 = vxpose.xlu0.b32.cont [2/16] 0.0, 128
        %378 = vxpose.xlu0.b32.cont [3/16] 0.0, 128
        %379 = vxpose.xlu0.b32.cont [4/16] 0.0, 128
        %380 = vxpose.xlu0.b32.cont [5/16] 0.0, 128
        %381 = vxpose.xlu0.b32.cont [6/16] 0.0, 128
        %382 = vxpose.xlu0.b32.cont [7/16] 0.0, 128
        %383 = vxpose.xlu0.b32.cont [8/16] 0.0, 128
        %384 = vxpose.xlu0.b32.cont [9/16] 0.0, 128
        %385 = vxpose.xlu0.b32.cont [10/16] 0.0, 128
        %386 = vxpose.xlu0.b32.cont [11/16] 0.0, 128
        %387 = vxpose.xlu0.b32.cont [12/16] 0.0, 128
        %388 = vxpose.xlu0.b32.cont [13/16] 0.0, 128
        %389 = vxpose.xlu0.b32.cont [14/16] 0.0, 128
        %390 = vxpose.xlu0.b32.cont [15/16] 0.0, 128
        %391 = vxpose.xlu0.b32.end [16/16] 0.0, 128
        %v392 = vpop.trf.xlu0
        %v393 = vpop.trf.xlu0
        %v394 = vpop.trf.xlu0
        %v395 = vpop.trf.xlu0
        %v396 = vpop.trf.xlu0
        %v397 = vpop.trf.xlu0
        %v398 = vpop.trf.xlu0
        %v399 = vpop.trf.xlu0
        %v400 = vpop.trf.xlu0
        %v401 = vpop.trf.xlu0
        %v402 = vpop.trf.xlu0
        %v403 = vpop.trf.xlu0
        %v404 = vpop.trf.xlu0
        %v405 = vpop.trf.xlu0
        %v406 = vpop.trf.xlu0
        %v407 = vpop.trf.xlu0
        %v408 = vlaneseq
        %v409 = vshrl.u32 %v408, 7
        %v410 = vsub.s32 0, %v409
        %v411 = vrot.slane %v392, %v410
        %v412 = vmul.f32 %v372, %v411
        %v413 = vmul.f32 %v373, %v411
        %v414 = vmul.f32 %v374, %v411
        %v415 = vmul.f32 %v375, %v411
        %v416 = vadd.f32 %v412, %v354
        %v417 = vadd.f32 %v413, %v359
        %v418 = vadd.f32 %v414, %v364
        %v419 = vadd.f32 %v415, %v369
        %vm420 = vcmask 31744
        %421 = vst.msk [vmem:[#allocation4] sm:$0xff] %vm420, %v416
        %422 = vst.msk [vmem:[#allocation4 + $0x8] sm:$0xff] %vm420, %v417
        %423 = vst.msk [vmem:[#allocation4 + $0x10] sm:$0xff] %vm420, %v418
        %424 = vst.msk [vmem:[#allocation4 + $0x18] sm:$0xff] %vm420, %v419
        %p425 = scmp.eq.s32.totalorder %s26, 1
        // Predicated region
        $region41: #{tpu_custom_call.1} parent=27 // pred_check
          %p426 = pneg %p425
        $region42: #{tpu_custom_call.1} parent=27 // pred_check_branch
          %428 = sbr.rel (%p426) target = $region44
        $region43: #{tpu_custom_call.1} parent=27 // pred_region
          %v429 = vld [vmem:[#allocation3] sm:$0xf]
          %v430 = vrcp.pop %v429
          %v431 = vld [vmem:[#allocation4] sm:$0xff]
          %v432 = vld [vmem:[#allocation4 + $0x8] sm:$0xff]
          %v433 = vld [vmem:[#allocation4 + $0x10] sm:$0xff]
          %v434 = vld [vmem:[#allocation4 + $0x18] sm:$0xff]
          %435 = vxpose.xlu0.b32.start [1/16] %v430, 128
          %436 = vxpose.xlu0.b32.cont [2/16] 0.0, 128
          %437 = vxpose.xlu0.b32.cont [3/16] 0.0, 128
          %438 = vxpose.xlu0.b32.cont [4/16] 0.0, 128
          %439 = vxpose.xlu0.b32.cont [5/16] 0.0, 128
          %440 = vxpose.xlu0.b32.cont [6/16] 0.0, 128
          %441 = vxpose.xlu0.b32.cont [7/16] 0.0, 128
          %442 = vxpose.xlu0.b32.cont [8/16] 0.0, 128
          %443 = vxpose.xlu0.b32.cont [9/16] 0.0, 128
          %444 = vxpose.xlu0.b32.cont [10/16] 0.0, 128
          %445 = vxpose.xlu0.b32.cont [11/16] 0.0, 128
          %446 = vxpose.xlu0.b32.cont [12/16] 0.0, 128
          %447 = vxpose.xlu0.b32.cont [13/16] 0.0, 128
          %448 = vxpose.xlu0.b32.cont [14/16] 0.0, 128
          %449 = vxpose.xlu0.b32.cont [15/16] 0.0, 128
          %450 = vxpose.xlu0.b32.end [16/16] 0.0, 128
          %v451 = vpop.trf.xlu0
          %v452 = vpop.trf.xlu0
          %v453 = vpop.trf.xlu0
          %v454 = vpop.trf.xlu0
          %v455 = vpop.trf.xlu0
          %v456 = vpop.trf.xlu0
          %v457 = vpop.trf.xlu0
          %v458 = vpop.trf.xlu0
          %v459 = vpop.trf.xlu0
          %v460 = vpop.trf.xlu0
          %v461 = vpop.trf.xlu0
          %v462 = vpop.trf.xlu0
          %v463 = vpop.trf.xlu0
          %v464 = vpop.trf.xlu0
          %v465 = vpop.trf.xlu0
          %v466 = vpop.trf.xlu0
          %v467 = vlaneseq
          %v468 = vshrl.u32 %v467, 7
          %v469 = vsub.s32 0, %v468
          %v470 = vrot.slane %v451, %v469
          %v471 = vmul.f32 %v431, %v470
          %v472 = vmul.f32 %v432, %v470
          %v473 = vmul.f32 %v433, %v470
          %v474 = vmul.f32 %v434, %v470
          %475 = vst.msk [vmem:[%s242] sm:$0xff] %vm420, %v471
          %476 = vst.msk [vmem:[%s242 + $0x8] sm:$0xff] %vm420, %v472
          %477 = vst.msk [vmem:[%s242 + $0x10] sm:$0xff] %vm420, %v473
          %478 = vst.msk [vmem:[%s242 + $0x18] sm:$0xff] %vm420, %v474
        $region44: #{tpu_custom_call.1} parent=27 // pred_fallthru
          _
        %s479 = smul.u32 4, %s25
        %p480 = scmp.lt.s32.totalorder %s24, 1
        %s481 = scalar_select %p480, %s24, 1
        %p482 = scmp.lt.s32.totalorder %s479, 3
        %s483 = scalar_select %p482, %s479, 3
        %s484 = smul.addr %s481, 4
        %s485 = sadd.s32 %s483, %s484
        %s486 = smul.addr %s485, 8
        %s487 = scalar_lea.vmem %s2, %s486
        // Predicated region
        $region45: #{tpu_custom_call.1} parent=27 // pred_check
          %p488 = pneg %p116
        $region46: #{tpu_custom_call.1} parent=27 // pred_check_branch
          %490 = sbr.rel (%p488) target = $region48
        $region47: #{tpu_custom_call.1} parent=27 // pred_region
          %s491 = smul.u32 4, %s25
        $region48: #{tpu_custom_call.1} parent=27 // pred_fallthru
          _
      $region28: #{tpu_custom_call.1} parent=5 // pred_fallthru
        _
      %p492 = scmp.le.s32.totalorder 2, %s14
      // Predicated region
      $region49: #{tpu_custom_call.1} parent=5 // pred_check
        %p493 = pneg %p492
      $region50: #{tpu_custom_call.1} parent=5 // pred_check_branch
        %495 = sbr.rel (%p493) target = $region52
      $region51: #{tpu_custom_call.1} parent=5 // pred_region
        %s496 = ssub.s32 %s14, 2
        // Predicated region
        $region53: #{tpu_custom_call.1} parent=51 // pred_check
          %p497 = pneg %p122
        $region54: #{tpu_custom_call.1} parent=51 // pred_check_branch
          %499 = sbr.rel (%p497) target = $region56
        $region55: #{tpu_custom_call.1} parent=51 // pred_region
          %s500 = smul.u32 4, %s28
          %p501 = scmp.lt.s32.totalorder %s27, 1
          %s502 = scalar_select %p501, %s27, 1
          %p503 = scmp.lt.s32.totalorder %s500, 3
          %s504 = scalar_select %p503, %s500, 3
          %s505 = smul.addr %s502, 4
          %s506 = sadd.s32 %s504, %s505
          %s507 = smul.addr %s506, 8
          %s508 = scalar_lea.vmem %s2, %s507
        $region56: #{tpu_custom_call.1} parent=51 // pred_fallthru
          _
      $region52: #{tpu_custom_call.1} parent=5 // pred_fallthru
        _
    $region6: #{tpu_custom_call.1} parent=1 // loop_footer
      %s18 = sadd.s32 1, %s14
    $region7: #{tpu_custom_call.1} parent=1 // loop_footer_branch
      %13 = sbr.rel target = $region3
    $region8: #{tpu_custom_call.1} parent=1 // loop_exit
      _
    %509 = vsyncpa [#allocation6], 1
    %s510 = scalar_lea.sflag [#allocation6], 1
    %511 = vsyncpa %s510, 1
    %512 = vsyncpa [#allocation8], 1
    %s513 = scalar_lea.sflag [#allocation8], 1
    %514 = vsyncpa %s513, 1

</llo_original>
